<compile_context>
chip_gen: v5e
topology: v5e:2x2
jax: 0.10.0
libtpu: 0.0.40
codegen_flags: <defaults>
</compile_context>

<pallas_src>
import jax
import jax.numpy as jnp
from jax.experimental import pallas as pl
from jax.experimental.pallas import tpu as pltpu


def _round_up(x, m):
    return ((x + m - 1) // m) * m


def _cdiv(a, b):
    return -(-a // b)


# Conservative working-set budget (bytes): fits v7x (64 MiB physical / 32 MiB
# scoped default) as well as v5e/v6e, including double-buffering.
_VMEM_BUDGET = 24 * 1024 * 1024
_VMEM_LIMIT = 48 * 1024 * 1024
_TM_CAP = 256
_TN_CAP = 512
_TK_CAP = 2048
# Below this many MACs the whole problem is ~one padded tile; plain XLA wins.
_TINY_MACS = 1 << 20


# ----------------------------------------------------------------------------- kernels
def _kernel_full_k(x_ref, w_ref, b_ref, o_ref):
    # Entire reduction dim resident in VMEM: one MXU matmul, f32 accumulation.
    acc = jnp.dot(x_ref[...], w_ref[...], preferred_element_type=jnp.float32)
    o_ref[...] = (acc + b_ref[...]).astype(o_ref.dtype)


def _kernel_tiled_k(x_ref, w_ref, b_ref, o_ref, acc_ref):
    # K-tiled reduction with f32 VMEM accumulator.
    k = pl.program_id(2)

    @pl.when(k == 0)
    def _():
        acc_ref[...] = jnp.zeros_like(acc_ref)

    acc_ref[...] += jnp.dot(x_ref[...], w_ref[...],
                            preferred_element_type=jnp.float32)

    @pl.when(k == pl.num_programs(2) - 1)
    def _():
        o_ref[...] = (acc_ref[...] + b_ref[...]).astype(o_ref.dtype)


# ----------------------------------------------------------------------------- planning
def _plan_tiles(LF, N):
    """Pick (TK, TN) and padded dims from the weight shape only (one-off)."""
    LF_pad = _round_up(LF, 128)
    N_pad = _round_up(N, 128)
    num_j = _cdiv(N_pad, _TN_CAP)
    TN = _round_up(_cdiv(N_pad, num_j), 128)
    N_pad = num_j * TN

    def vmem_bytes(TK, full_k):
        x_b = 2 * _TM_CAP * TK * 2        # bf16 x, double buffered
        w_b = 2 * TK * TN * 2             # bf16 weight, double buffered
        b_b = 2 * TN * 4                  # f32 bias
        o_b = 2 * _TM_CAP * TN * 4        # f32 out
        acc = 0 if full_k else _TM_CAP * TN * 4
        return x_b + w_b + b_b + o_b + acc

    if vmem_bytes(LF_pad, True) <= _VMEM_BUDGET:
        return dict(full_k=True, TK=LF_pad, LF_pad=LF_pad,
                    TN=TN, N_pad=N_pad, num_j=num_j, num_k=1)

    num_k = _cdiv(LF_pad, _TK_CAP)
    TK = _round_up(_cdiv(LF_pad, num_k), 128)
    while vmem_bytes(TK, False) > _VMEM_BUDGET and TK > 128:
        TK = max(128, _round_up(TK // 2, 128))
    num_k = _cdiv(LF_pad, TK)
    LF_pad = num_k * TK
    return dict(full_k=False, TK=TK, LF_pad=LF_pad,
                TN=TN, N_pad=N_pad, num_j=num_j, num_k=num_k)


def prepare_params(weight, bias, param_dtype=jnp.bfloat16, plan_override=None):
    """One-off parameter relayout + pad + cast (init time, NOT the hot path).

    weight : [C, T, LF]  (torch nn.Linear.weight stacked over out_channel)
    bias   : [C, T]
    Fused layout: W2[LF, T*C] with column n = t*C + c, so y = x_flat @ W2 + b2 and
    the [B, T*C] -> [B, T, C] reshape is free.
    """
    C, T, LF = weight.shape
    N = T * C
    plan = plan_override if plan_override is not None else _plan_tiles(LF, N)
    w_fused = jnp.transpose(weight, (2, 1, 0)).reshape(LF, N)
    b_fused = jnp.transpose(bias, (1, 0)).reshape(1, N)
    w_pad = jnp.pad(w_fused, ((0, plan["LF_pad"] - LF), (0, plan["N_pad"] - N)))
    b_pad = jnp.pad(b_fused, ((0, 0), (0, plan["N_pad"] - N)))
    return dict(w=w_pad.astype(param_dtype),
                b=b_pad.astype(jnp.float32),   # bias tiny; keep f32 for accuracy
                T=T, C=C, LF=LF, N=N, plan=plan)


# ----------------------------------------------------------------------------- forward
def ltsf_linear_forward(x, params, force_pallas=False):
    """x: [B, L, in_channel] -> [B, T] if out_channel == 1 else [B, T, out_channel]."""
    B = x.shape[0]
    LF, N, T, C = params["LF"], params["N"], params["T"], params["C"]
    plan = params["plan"]
    w, b = params["w"], params["b"]
    assert x.shape[1] * x.shape[2] == LF

    x_flat = x.reshape(B, LF)          # torch .flatten(-2): glue reshape
    out_dtype = x.dtype

    if (not force_pallas) and (B * LF * N < _TINY_MACS):
        # Tiny-shape fast path: one small tile -> plain XLA beats pallas_call overhead.
        y = (jnp.dot(x_flat.astype(w.dtype), w[:LF, :],
                     preferred_element_type=jnp.float32) + b)[:, :N]
        y = y.astype(out_dtype)
        return y if C == 1 else y.reshape(B, T, C)

    # Balanced batch tiling (16-row grain for bf16 sublane packing).
    num_i = _cdiv(B, _TM_CAP)
    TM = _round_up(_cdiv(B, num_i), 16)
    B_pad = num_i * TM

    LF_pad, N_pad = plan["LF_pad"], plan["N_pad"]
    TK, TN = plan["TK"], plan["TN"]
    num_j, num_k = plan["num_j"], plan["num_k"]

    x_p = x_flat.astype(w.dtype)
    if (B_pad, LF_pad) != (B, LF):
        x_p = jnp.pad(x_p, ((0, B_pad - B), (0, LF_pad - LF)))

    cost = pl.CostEstimate(
        flops=2 * B * LF * N,
        transcendentals=0,
        bytes_accessed=(B_pad * LF_pad * 2 + LF_pad * N_pad * 2
                        + N_pad * 4 + B_pad * N_pad * 4),
    )

    if plan["full_k"]:
        # Grid ordered (j, i): weight/bias block index depends only on j, so the
        # weight is fetched from HBM exactly once per call and held across batch tiles.
        if num_i >= 4:
            x_spec = pl.BlockSpec((TM, TK), lambda j, i: (i, 0),
                                  pipeline_mode=pl.Buffered(3))
        else:
            x_spec = pl.BlockSpec((TM, TK), lambda j, i: (i, 0))
        out_pad = pl.pallas_call(
            _kernel_full_k,
            out_shape=jax.ShapeDtypeStruct((B_pad, N_pad), out_dtype),
            grid_spec=pltpu.PrefetchScalarGridSpec(
                num_scalar_prefetch=0,
                grid=(num_j, num_i),
                in_specs=[
                    x_spec,
                    pl.BlockSpec((TK, TN), lambda j, i: (0, j)),
                    pl.BlockSpec((1, TN), lambda j, i: (0, j)),
                ],
                out_specs=pl.BlockSpec((TM, TN), lambda j, i: (i, j)),
                scratch_shapes=[],
            ),
            compiler_params=pltpu.CompilerParams(
                dimension_semantics=("parallel", "parallel"),
                vmem_limit_bytes=_VMEM_LIMIT),
            cost_estimate=cost,
        )(x_p, w, b)
    else:
        if num_k >= 4:
            # Deeper buffering keeps the HBM weight stream saturated when M is skinny.
            xw_specs = [
                pl.BlockSpec((TM, TK), lambda i, j, k: (i, k),
                             pipeline_mode=pl.Buffered(3)),
                pl.BlockSpec((TK, TN), lambda i, j, k: (k, j),
                             pipeline_mode=pl.Buffered(3)),
            ]
        else:
            xw_specs = [
                pl.BlockSpec((TM, TK), lambda i, j, k: (i, k)),
                pl.BlockSpec((TK, TN), lambda i, j, k: (k, j)),
            ]
        out_pad = pl.pallas_call(
            _kernel_tiled_k,
            out_shape=jax.ShapeDtypeStruct((B_pad, N_pad), out_dtype),
            grid_spec=pltpu.PrefetchScalarGridSpec(
                num_scalar_prefetch=0,
                grid=(num_i, num_j, num_k),
                in_specs=xw_specs + [pl.BlockSpec((1, TN), lambda i, j, k: (0, j))],
                out_specs=pl.BlockSpec((TM, TN), lambda i, j, k: (i, j)),
                scratch_shapes=[pltpu.VMEM((TM, TN), jnp.float32)],
            ),
            compiler_params=pltpu.CompilerParams(
                dimension_semantics=("parallel", "parallel", "arbitrary"),
                vmem_limit_bytes=_VMEM_LIMIT),
            cost_estimate=cost,
        )(x_p, w, b)

    out = out_pad[:B, :N]
    return out if C == 1 else out.reshape(B, T, C)


# ----------------------------------------------------------------------------- helpers
def init_params(key, L, T, in_channel, out_channel, dtype=jnp.float32):
    """Deterministic nn.Linear-style init: U(-1/sqrt(fan_in), 1/sqrt(fan_in))."""
    LF = L * in_channel
    bound = 1.0 / float(LF) ** 0.5
    kw, kb = jax.random.split(key)
    weight = jax.random.uniform(kw, (out_channel, T, LF), dtype, -bound, bound)
    bias = jax.random.uniform(kb, (out_channel, T), dtype, -bound, bound)
    return weight, bias


def _reference(x, weight, bias, param_dtype=jnp.bfloat16):
    """Pure-JAX reference matching the kernel's quantization (bf16 operands, f32 acc)."""
    B = x.shape[0]
    C, T, LF = weight.shape
    x_flat = x.reshape(B, LF).astype(param_dtype).astype(jnp.float32)
    w = weight.astype(param_dtype).astype(jnp.float32)
    y = jnp.einsum("bk,ctk->btc", x_flat, w) + bias.astype(jnp.float32).T[None]
    return y[..., 0] if C == 1 else y


# ----------------------------------------------------------------------------- self-test
if __name__ == "__main__":
    key = jax.random.PRNGKey(0)
    kx, kp1, kp2, kx3, kp3 = jax.random.split(key, 5)

    # Case 1: multi-output-channel LTSFLinear (out_channel > 1) -> [B, T, C]
    B, L, Cin, T, C = 2, 8, 4, 8, 3
    x = jax.random.normal(kx, (B, L, Cin), jnp.float32)
    w, b = init_params(kp1, L, T, Cin, C)
    params = prepare_params(w, b)                              # one-off relayout/pad/cast
    y_pallas = jax.block_until_ready(ltsf_linear_forward(x, params, force_pallas=True))
    y_fast = jax.block_until_ready(ltsf_linear_forward(x, params))   # tiny-shape XLA path
    y_ref = _reference(x, w, b)
    assert y_pallas.shape == (B, T, C), y_pallas.shape
    assert jnp.allclose(y_pallas, y_ref, atol=1e-3, rtol=1e-3)
    assert jnp.allclose(y_fast, y_ref, atol=1e-3, rtol=1e-3)

    # Case 2: single-output-channel (out_channel == 1) -> [B, T]
    w1, b1 = init_params(kp2, L, T, Cin, 1)
    params1 = prepare_params(w1, b1)
    y1 = jax.block_until_ready(ltsf_linear_forward(x, params1, force_pallas=True))
    y1_ref = _reference(x, w1, b1)
    assert y1.shape == (B, T), y1.shape
    assert jnp.allclose(y1, y1_ref, atol=1e-3, rtol=1e-3)

    # Case 3: exercise the K-tiled accumulator kernel via a plan override
    B3, L3, Cin3, T3, C3 = 4, 64, 4, 64, 2          # LF = 256, N = 128
    x3 = jax.random.normal(kx3, (B3, L3, Cin3), jnp.float32)
    w3, b3 = init_params(kp3, L3, T3, Cin3, C3)
    plan3 = dict(full_k=False, TK=128, LF_pad=256, TN=128, N_pad=128, num_j=1, num_k=2)
    params3 = prepare_params(w3, b3, plan_override=plan3)
    y3 = jax.block_until_ready(ltsf_linear_forward(x3, params3, force_pallas=True))
    y3_ref = _reference(x3, w3, b3)
    assert y3.shape == (B3, T3, C3), y3.shape
    assert jnp.allclose(y3, y3_ref, atol=2e-3, rtol=2e-3)

    print("KERNEL_OK")
</pallas_src>

<mosaic_0001>
module attributes {stable_mosaic.version = 11 : i64} {
  func.func @_kernel_full_k(%arg0: i32, %arg1: i32, %arg2: memref<16x128xbf16, #tpu.memory_space<vmem>>, %arg3: memref<128x128xbf16, #tpu.memory_space<vmem>>, %arg4: memref<1x128xf32, #tpu.memory_space<vmem>>, %arg5: memref<16x128xf32, #tpu.memory_space<vmem>>) attributes {dimension_semantics = [#tpu.dimension_semantics<parallel>, #tpu.dimension_semantics<parallel>], iteration_bounds = array<i64: 1, 1>, scalar_prefetch = 0 : i64, scratch_operands = 0 : i64, tpu.core_type = #tpu.core_type<tc>, window_params = [{transform_indices = @transform_0, window_bounds = array<i64: 16, 128>}, {transform_indices = @transform_1, window_bounds = array<i64: 128, 128>}, {transform_indices = @transform_2, window_bounds = array<i64: 1, 128>}, {transform_indices = @transform_3, window_bounds = array<i64: 16, 128>}]} {
    %c0 = arith.constant 0 : index
    %c0_0 = arith.constant 0 : index
    %0 = vector.load %arg2[%c0, %c0_0] : memref<16x128xbf16, #tpu.memory_space<vmem>>, vector<16x128xbf16>
    %c0_1 = arith.constant 0 : index
    %c0_2 = arith.constant 0 : index
    %1 = vector.load %arg3[%c0_1, %c0_2] : memref<128x128xbf16, #tpu.memory_space<vmem>>, vector<128x128xbf16>
    %cst = arith.constant dense<0.000000e+00> : vector<16x128xf32>
    %2 = tpu.matmul %0, %1, %cst {dimension_numbers = #tpu.dot_dimension_numbers<[1], [0], [0], [1], [0, 0, 1, 1], [], []>} : vector<16x128xbf16>, vector<128x128xbf16>, vector<16x128xf32> -> vector<16x128xf32>
    %c0_3 = arith.constant 0 : index
    %c0_4 = arith.constant 0 : index
    %3 = vector.load %arg4[%c0_3, %c0_4] : memref<1x128xf32, #tpu.memory_space<vmem>>, vector<1x128xf32>
    %4 = vector.broadcast %3 : vector<1x128xf32> to vector<16x128xf32>
    %5 = arith.addf %2, %4 : vector<16x128xf32>
    %c0_5 = arith.constant 0 : index
    %c0_6 = arith.constant 0 : index
    %6 = vector.load %arg5[%c0_5, %c0_6] : memref<16x128xf32, #tpu.memory_space<vmem>>, vector<16x128xf32>
    tpu.vector_store %arg5[%c0_5, %c0_6], %5 {strides = array<i32>} : memref<16x128xf32, #tpu.memory_space<vmem>>, vector<16x128xf32>,
    return
  }
  func.func @transform_0(%arg0: i32, %arg1: i32) -> (i32, i32) {
    %c0_i32 = arith.constant 0 : i32
    %c0_i32_0 = arith.constant 0 : i32
    return %arg1, %c0_i32 : i32, i32
  }
  func.func @transform_1(%arg0: i32, %arg1: i32) -> (i32, i32) {
    %c0_i32 = arith.constant 0 : i32
    %c0_i32_0 = arith.constant 0 : i32
    return %c0_i32, %arg0 : i32, i32
  }
  func.func @transform_2(%arg0: i32, %arg1: i32) -> (i32, i32) {
    %c0_i32 = arith.constant 0 : i32
    %c0_i32_0 = arith.constant 0 : i32
    return %c0_i32, %arg0 : i32, i32
  }
  func.func @transform_3(%arg0: i32, %arg1: i32) -> (i32, i32) {
    %c0_i32 = arith.constant 0 : i32
    return %arg1, %arg0 : i32, i32
  }
}

</mosaic_0001>

<llo_original>
// kernel: tpu_custom_call.1
$region0: #{tpu_custom_call.1}
  #allocation0 [shape = 'u32[]', space=smem, size = 0x4, offset = 0x4, fixed_abs, tag = 'smem constant byte address 0x4 - core index']
  #allocation1 [shape = 'u32[72,128]{1,0:T(1,128)}', space=vmem, size = 0x9000, scoped, tag = 'internal scratch']
  %s0 = inlined_call_operand.hbm [shape: bf16[16,128], index: 0, kind: input, shape index: {}]
  %s1 = inlined_call_operand.hbm [shape: bf16[128,128], index: 1, kind: input, shape index: {}]
  %s2 = inlined_call_operand.vmem [shape: f32[1,128], index: 2, kind: input, shape index: {}]
  %s3 = inlined_call_operand.hbm [shape: f32[16,128], index: 3, kind: output, shape index: {}]
  %s4 = sld [smem:[#allocation0]]
  $region30: #{tpu_custom_call.1} parent=0
    _
  %s6 = ssub.s32 1, %s4
  %s7 = scalar_select 0, %s6, %s4
  $region1: #{tpu_custom_call.1} parent=0
    #allocation2 [shape = 'u8[4096]{0}', space=vmem, size = 0x1000, scoped, tag = 'input window, operand 0, single buffered']
    #allocation3 [shape = 's32[1]{0}', space=sflag, size = 0x4, scoped, tag = 'scoped memory for tpu_custom_call.1']
    #allocation4 [shape = 's32[1]{0}', space=sflag, size = 0x4, scoped, tag = 'scoped memory for tpu_custom_call.1']
    #allocation5 [shape = 'u8[32768]{0}', space=vmem, size = 0x8000, scoped, tag = 'input window, operand 1, single buffered']
    #allocation6 [shape = 's32[1]{0}', space=sflag, size = 0x4, scoped, tag = 'scoped memory for tpu_custom_call.1']
    #allocation7 [shape = 'u8[8192]{0}', space=vmem, size = 0x2000, scoped, tag = 'output window, operand 0, single buffered']
    %8 = vsyncpa [#allocation3], 0
    %9 = vsyncpa [#allocation6], 0
    %10 = vsyncpa [#allocation4], 0
    // Predicated region
    $region2: #{tpu_custom_call.1} parent=1 // pred_check
      _
    $region3: #{tpu_custom_call.1} parent=1 // pred_check_branch
      %12 = sbr.rel (0) target = $region5
    $region4: #{tpu_custom_call.1} parent=1 // pred_region
      %14 = vsyncadd [#allocation3], 0
      %s15 = sshll.u32 %s0, 4
      %s16 = int_to_ptr.hbm [resolvable:$true] %s15
      %s17 = sshll.u32 [#allocation2], 4
      %s18 = int_to_ptr.vmem [resolvable:$true] %s17
      %23 = dma.hbm_to_vmem [thread:$0]  %s16, 128, %s18, [#allocation3], 64, 64, 4
    $region5: #{tpu_custom_call.1} parent=1 // pred_fallthru
      _
    // Predicated region
    $region6: #{tpu_custom_call.1} parent=1 // pred_check
      _
    $region7: #{tpu_custom_call.1} parent=1 // pred_check_branch
      %25 = sbr.rel (0) target = $region9
    $region8: #{tpu_custom_call.1} parent=1 // pred_region
      %27 = vsyncadd [#allocation6], 0
      %s28 = sshll.u32 %s1, 4
      %s29 = int_to_ptr.hbm [resolvable:$true] %s28
      %s30 = sshll.u32 [#allocation5], 4
      %s31 = int_to_ptr.vmem [resolvable:$true] %s30
      %36 = dma.hbm_to_vmem [thread:$0]  %s29, 1024, %s31, [#allocation6], 64, 64, 4
    $region9: #{tpu_custom_call.1} parent=1 // pred_fallthru
      _
    // Predicated region
    $region10: #{tpu_custom_call.1} parent=1 // pred_check
      _
    $region11: #{tpu_custom_call.1} parent=1 // pred_check_branch
      %38 = sbr.rel (0) target = $region13
    $region12: #{tpu_custom_call.1} parent=1 // pred_region
      _
    $region13: #{tpu_custom_call.1} parent=1 // pred_fallthru
      _
    // Predicated region
    $region14: #{tpu_custom_call.1} parent=1 // pred_check
      _
    $region15: #{tpu_custom_call.1} parent=1 // pred_check_branch
      %40 = sbr.rel (0) target = $region17
    $region16: #{tpu_custom_call.1} parent=1 // pred_region
      %42 = dma.done [#allocation3], 128
    $region17: #{tpu_custom_call.1} parent=1 // pred_fallthru
      _
    // Predicated region
    $region18: #{tpu_custom_call.1} parent=1 // pred_check
      _
    $region19: #{tpu_custom_call.1} parent=1 // pred_check_branch
      %44 = sbr.rel (0) target = $region21
    $region20: #{tpu_custom_call.1} parent=1 // pred_region
      %46 = dma.done [#allocation6], 1024
    $region21: #{tpu_custom_call.1} parent=1 // pred_fallthru
      _
    %v47 = vld [vmem:[#allocation2] sm:$0xf]
    %v48 = vld [vmem:[#allocation2 + $0x4] sm:$0xf]
    %v49 = vld [vmem:[#allocation5] sm:$0xf]
    %v50 = vld [vmem:[#allocation5 + $0x4] sm:$0xf]
    %v51 = vld [vmem:[#allocation5 + $0x8] sm:$0xf]
    %v52 = vld [vmem:[#allocation5 + $0xc] sm:$0xf]
    %v53 = vld [vmem:[#allocation5 + $0x10] sm:$0xf]
    %v54 = vld [vmem:[#allocation5 + $0x14] sm:$0xf]
    %v55 = vld [vmem:[#allocation5 + $0x18] sm:$0xf]
    %v56 = vld [vmem:[#allocation5 + $0x1c] sm:$0xf]
    %v57 = vld [vmem:[#allocation5 + $0x20] sm:$0xf]
    %v58 = vld [vmem:[#allocation5 + $0x24] sm:$0xf]
    %v59 = vld [vmem:[#allocation5 + $0x28] sm:$0xf]
    %v60 = vld [vmem:[#allocation5 + $0x2c] sm:$0xf]
    %v61 = vld [vmem:[#allocation5 + $0x30] sm:$0xf]
    %v62 = vld [vmem:[#allocation5 + $0x34] sm:$0xf]
    %v63 = vld [vmem:[#allocation5 + $0x38] sm:$0xf]
    %v64 = vld [vmem:[#allocation5 + $0x3c] sm:$0xf]
    %v65 = vld [vmem:[%s2] sm:$0x1]
    %v67 = vperm.slane %v65, 0
    %v71 = vunpack.c.l.b16 %v47
    %v72 = vunpack.c.l.b16 %v48
    %v73 = vpack.c.b16 %v72, %v71
    %v91 = vunpack.c.l.b16 %v49
    %v92 = vunpack.c.l.b16 %v50
    %v93 = vunpack.c.l.b16 %v51
    %v94 = vunpack.c.l.b16 %v52
    %v95 = vunpack.c.l.b16 %v53
    %v96 = vunpack.c.l.b16 %v54
    %v97 = vunpack.c.l.b16 %v55
    %v98 = vunpack.c.l.b16 %v56
    %v99 = vunpack.c.l.b16 %v57
    %v100 = vunpack.c.l.b16 %v58
    %v101 = vunpack.c.l.b16 %v59
    %v102 = vunpack.c.l.b16 %v60
    %v103 = vunpack.c.l.b16 %v61
    %v104 = vunpack.c.l.b16 %v62
    %v105 = vunpack.c.l.b16 %v63
    %v106 = vunpack.c.l.b16 %v64
    %v107 = vpack.c.b16 %v92, %v91
    %v108 = vpack.c.b16 %v94, %v93
    %v109 = vpack.c.b16 %v96, %v95
    %v110 = vpack.c.b16 %v98, %v97
    %v111 = vpack.c.b16 %v100, %v99
    %v112 = vpack.c.b16 %v102, %v101
    %v113 = vpack.c.b16 %v104, %v103
    %v114 = vpack.c.b16 %v106, %v105
    %123 = vmatpush.bf16.msra.mxu0 %v114
    %124 = vmatpush.bf16.msra.mxu0 %v113
    %125 = vmatpush.bf16.msra.mxu0 %v112
    %126 = vmatpush.bf16.msra.mxu0 %v111
    %127 = vmatpush.bf16.msra.mxu0 %v110
    %128 = vmatpush.bf16.msra.mxu0 %v109
    %129 = vmatpush.bf16.msra.mxu0 %v108
    %130 = vmatpush.bf16.msra.mxu0 %v107
    %131 = vmatmul.bf16.gmra.mxu0 %v73
    %v132 = vpop.f32.mrf.mxu0
    %v133 = vadd.f32 %v67, %v132
    %v134 = vpop.f32.mrf.mxu0
    %v135 = vadd.f32 %v67, %v134
    %136 = vdwg.mxu0
    %137 = vst [vmem:[#allocation7] sm:$0xff] %v133
    %138 = vst [vmem:[#allocation7 + $0x8] sm:$0xff] %v135
    // Predicated region
    $region22: #{tpu_custom_call.1} parent=1 // pred_check
      _
    $region23: #{tpu_custom_call.1} parent=1 // pred_check_branch
      %140 = sbr.rel (0) target = $region25
    $region24: #{tpu_custom_call.1} parent=1 // pred_region
      %142 = vsyncadd [#allocation4], 0
      %s143 = sshll.u32 [#allocation7], 4
      %s144 = int_to_ptr.vmem [resolvable:$true] %s143
      %s145 = sshll.u32 %s3, 4
      %s146 = int_to_ptr.hbm [resolvable:$true] %s145
      %151 = dma.vmem_to_hbm [thread:$0]  %s144, 256, %s146, [#allocation4], 128, 128, 8
    $region25: #{tpu_custom_call.1} parent=1 // pred_fallthru
      _
    // Predicated region
    $region26: #{tpu_custom_call.1} parent=1 // pred_check
      _
    $region27: #{tpu_custom_call.1} parent=1 // pred_check_branch
      %153 = sbr.rel (0) target = $region29
    $region28: #{tpu_custom_call.1} parent=1 // pred_region
      %155 = dma.done [#allocation4], 256
    $region29: #{tpu_custom_call.1} parent=1 // pred_fallthru
      _
    %156 = vsyncpa [#allocation3], 1
    %157 = vsyncpa [#allocation6], 1
    %158 = vsyncpa [#allocation4], 1

</llo_original>
